<compile_context>
chip_gen: v6e
topology: v6e:2x2x1
jax: 0.10.0
libtpu: 0.0.40
codegen_flags: <defaults>
</compile_context>

<pallas_src>
import jax
import jax.numpy as jnp
from jax.experimental import pallas as pl
from jax.experimental.pallas import tpu as pltpu


_LANE = 128       # vreg lane width
_SUBLANE = 8      # vreg sublane count (f32)


def _round_up(x, m):
    return ((x + m - 1) // m) * m


# ----------------------------- Pallas kernel --------------------------------
def _mn_infer_kernel(ids_ref, emb_ref, w1_ref, b1_ref, w2_ref, b2_ref,
                     probs_ref, next_ref):
    """Fused gather + 2-layer MLP + softmax + argmax for one row tile."""
    tm = ids_ref.shape[0]
    vemb = emb_ref.shape[0]

    # Embedding gather fused on the MXU via a one-hot matmul: only int32 ids
    # are read from HBM, the (tok_emb + cond) bf16 table stays resident.
    ids = ids_ref[...]                                              # (tm, 1) i32
    col = jax.lax.broadcasted_iota(jnp.int32, (tm, vemb), 1)
    onehot = (col == ids).astype(jnp.bfloat16)                      # (tm, Vemb)
    x = jnp.dot(onehot, emb_ref[...],
                preferred_element_type=jnp.float32)                 # (tm, Hp) f32

    # layer 1: bf16 MXU operands, f32 accumulation, f32 tanh (EUP)
    h = jnp.tanh(
        jnp.dot(x.astype(jnp.bfloat16), w1_ref[...],
                preferred_element_type=jnp.float32) + b1_ref[...])  # (tm, Hp)

    # layer 2: padded vocab lanes carry b2 = -inf -> exp is exactly 0
    logits = (jnp.dot(h.astype(jnp.bfloat16), w2_ref[...],
                      preferred_element_type=jnp.float32)
              + b2_ref[...])                                        # (tm, Vp)

    # max-subtracted softmax, f32 math, EUP reciprocal; bf16 writeback
    m = jnp.max(logits, axis=-1, keepdims=True)
    e = jnp.exp(logits - m)
    denom = jnp.sum(e, axis=-1, keepdims=True)
    probs_ref[...] = (e * pl.reciprocal(denom, approx=True)).astype(probs_ref.dtype)

    # fused greedy decode: first-occurrence argmax (matches jnp.argmax)
    vp = logits.shape[-1]
    lane_ids = jax.lax.broadcasted_iota(jnp.int32, logits.shape, 1)
    # TODO(synk): last-dim-1 output uses a masked vst; bytes are tiny, left as-is.
    next_ref[...] = jnp.min(jnp.where(logits == m, lane_ids, vp),
                            axis=-1, keepdims=True).astype(jnp.int32)


def _vmem_limit_bytes(tm, hp, vp, vemb_p):
    """Explicit scoped-VMEM budget: v5e default is 16 MiB, v7x physical 64 MiB/TC."""
    resident = (vemb_p * hp + hp * hp + hp * vp) * 2 + (hp + vp) * 4  # bf16 W, f32 b
    per_step = tm * _LANE * 4 + tm * vp * 2 + tm * _LANE * 4          # ids + probs + next
    need = resident + 2 * per_step                                    # double-buffered I/O
    return int(min(max(2 * need + (4 << 20), 16 << 20), 64 << 20))


def _mn_infer(ids, emb_bf16, w1_bf16, b1, w2_bf16, b2, *, block_rows):
    """ids: (Rp, 1) i32.  Returns ((Rp, Vp) bf16 probs, (Rp, 1) i32 tokens)."""
    rp = ids.shape[0]
    vemb_p, hp = emb_bf16.shape
    vp = w2_bf16.shape[1]
    tm = block_rows
    assert rp % tm == 0 and tm % _SUBLANE == 0
    grid = (rp // tm,)

    cost = pl.CostEstimate(
        flops=2 * rp * (vemb_p * hp + hp * hp + hp * vp),
        transcendentals=rp * (hp + vp),
        bytes_accessed=(ids.size * 4
                        + emb_bf16.size * 2 + w1_bf16.size * 2 + w2_bf16.size * 2
                        + b1.size * 4 + b2.size * 4
                        + rp * vp * 2 + rp * 4),
    )

    def resident(shape):
        # constant index_map -> single-buffer to halve the resident VMEM footprint
        return pl.BlockSpec(shape, lambda i: (0, 0), pipeline_mode=pl.Buffered(1))

    return pl.pallas_call(
        _mn_infer_kernel,
        out_shape=(jax.ShapeDtypeStruct((rp, vp), jnp.bfloat16),
                   jax.ShapeDtypeStruct((rp, 1), jnp.int32)),
        grid=grid,
        in_specs=[
            pl.BlockSpec((tm, 1), lambda i: (i, 0)),   # token ids (pipelined)
            resident((vemb_p, hp)),                    # fused (tok+cond) emb, bf16
            resident((hp, hp)),                        # W1 bf16
            resident((1, hp)),                         # b1 f32
            resident((hp, vp)),                        # W2 bf16
            resident((1, vp)),                         # b2 f32 (-inf padded lanes)
        ],
        out_specs=(pl.BlockSpec((tm, vp), lambda i: (i, 0)),   # lane-dense bf16 probs
                   pl.BlockSpec((tm, 1), lambda i: (i, 0))),   # next-token ids
        compiler_params=pltpu.CompilerParams(
            dimension_semantics=("parallel",),                 # v7x: rows across 2 TCs
            vmem_limit_bytes=_vmem_limit_bytes(tm, hp, vp, vemb_p)),
        cost_estimate=cost,
    )(ids, emb_bf16, w1_bf16, b1, w2_bf16, b2)


# --------------------------- Wrapper (module port) ---------------------------
class MeasureNoteWrapper:
    """JAX port of pt2onnx_ver2.MeasureNoteWrapper.

    `model` is represented by its parameter pytree; `vocab` by its size;
    `header` / `key_mode` are integer conditioning ids.  The conditioning
    vector is folded into the token-embedding table once at construction
    time; parameters are padded to lane-dense (128-multiple) shapes and MXU
    operands cast to bf16 once.
    """

    def __init__(self, params, vocab_size, header, key_mode, block_rows=512):
        self.vocab_size = vocab_size
        self.header = header
        self.key_mode = key_mode
        self.block_rows = block_rows

        hidden = params["tok_emb"].shape[1]
        hp = _round_up(hidden, _LANE)
        vp = _round_up(vocab_size, _LANE)
        vemb_p = _round_up(vocab_size, _LANE)
        self._hp, self._vp = hp, vp
        pad_h = hp - hidden
        pad_v = vp - vocab_size

        # conditioning is fixed per wrapper -> fold it into the table and store
        # bf16 (halves the resident table and all lookup bandwidth)
        cond = (params["hdr_emb"][header]
                + params["key_emb"][key_mode]).astype(jnp.float32)
        emb = params["tok_emb"].astype(jnp.float32) + cond[None, :]
        self.emb = jnp.pad(emb, ((0, vemb_p - vocab_size), (0, pad_h))
                           ).astype(jnp.bfloat16)

        # MXU operands in bf16 (f32 accumulation in-kernel); biases stay f32
        self.w1 = jnp.pad(params["w1"].astype(jnp.float32),
                          ((0, pad_h), (0, pad_h))).astype(jnp.bfloat16)
        self.b1 = jnp.pad(params["b1"].astype(jnp.float32).reshape(1, hidden),
                          ((0, 0), (0, pad_h)))
        self.w2 = jnp.pad(params["w2"].astype(jnp.float32),
                          ((0, pad_h), (0, pad_v))).astype(jnp.bfloat16)
        # padded vocab lanes masked to -inf so softmax mass / argmax can't leak
        self.b2 = jnp.pad(params["b2"].astype(jnp.float32).reshape(1, vocab_size),
                          ((0, 0), (0, pad_v)), constant_values=-jnp.inf)

    def __call__(self, seed):
        return self.forward(seed)

    def forward(self, seed, trim=True):
        # seed: int32 token ids of shape (B, S)
        B, S = seed.shape
        R = B * S
        rp = _round_up(max(R, _SUBLANE), _SUBLANE)
        # cap the row tile at rp//2 so the grid has >=2 steps where possible:
        # v7x then shards rows over both TensorCores and pipelining stays alive
        tm = min(self.block_rows,
                 max(_SUBLANE, (rp // 2 // _SUBLANE) * _SUBLANE))
        rp = _round_up(rp, tm)

        ids = jnp.pad(seed.reshape(-1).astype(jnp.int32),
                      (0, rp - R)).reshape(rp, 1)

        probs_p, next_p = _mn_infer(ids, self.emb, self.w1, self.b1,
                                    self.w2, self.b2, block_rows=tm)

        next_tokens = next_p[:R, 0].reshape(B, S)
        if not trim:
            # padded vocab lanes are exactly 0 -> consumers can index directly,
            # saving one extra HBM pass over the largest array
            return probs_p[:R].reshape(B, S, self._vp), next_tokens
        probs = probs_p[:R, :self.vocab_size].reshape(B, S, self.vocab_size)
        return probs, next_tokens


# --------------------------- Deterministic init ------------------------------
def init_params(key, vocab_size, hidden, n_headers, n_key_modes):
    ks = jax.random.split(key, 6)
    scale_h = 1.0 / jnp.sqrt(hidden)
    return {
        "tok_emb": jax.random.normal(ks[0], (vocab_size, hidden), jnp.float32) * 0.02,
        "hdr_emb": jax.random.normal(ks[1], (n_headers, hidden), jnp.float32) * 0.02,
        "key_emb": jax.random.normal(ks[2], (n_key_modes, hidden), jnp.float32) * 0.02,
        "w1": jax.random.normal(ks[3], (hidden, hidden), jnp.float32) * scale_h,
        "b1": jnp.zeros((1, hidden), jnp.float32),
        "w2": jax.random.normal(ks[4], (hidden, vocab_size), jnp.float32) * scale_h,
        "b2": jnp.zeros((1, vocab_size), jnp.float32),
    }


def _reference_probs(params, seed, header, key_mode):
    """Pure-JAX f32 reference of the hot path, for a loose numerical check."""
    tok = jnp.take(params["tok_emb"], seed, axis=0)
    cond = params["hdr_emb"][header] + params["key_emb"][key_mode]
    x = (tok + cond).astype(jnp.float32)
    h = jnp.tanh(x @ params["w1"] + params["b1"])
    logits = h @ params["w2"] + params["b2"]
    return jax.nn.softmax(logits, axis=-1)


if __name__ == "__main__":
    VOCAB = 32     # synthetic note/measure vocabulary size
    HIDDEN = 32
    BATCH, SEQ = 2, 8
    N_HEADERS, N_KEY_MODES = 4, 2

    key = jax.random.PRNGKey(0)
    pkey, skey = jax.random.split(key)
    params = init_params(pkey, VOCAB, HIDDEN, N_HEADERS, N_KEY_MODES)

    wrapper = MeasureNoteWrapper(params, vocab_size=VOCAB, header=1, key_mode=0)

    seed_tokens = jax.random.randint(skey, (BATCH, SEQ), 0, VOCAB, dtype=jnp.int32)
    probs, next_tokens = wrapper(seed_tokens)
    jax.block_until_ready((probs, next_tokens))

    # sanity checks (tolerances absorb bf16 MXU operands, bf16 probs output,
    # and the approx EUP reciprocal)
    assert probs.shape == (BATCH, SEQ, VOCAB)
    assert next_tokens.shape == (BATCH, SEQ)
    probs_f32 = probs.astype(jnp.float32)
    assert bool(jnp.allclose(jnp.sum(probs_f32, axis=-1), 1.0, atol=2e-2))
    assert bool(jnp.all(probs_f32 >= 0.0))
    assert bool(jnp.all((next_tokens >= 0) & (next_tokens < VOCAB)))
    ref = _reference_probs(params, seed_tokens, header=1, key_mode=0)
    assert bool(jnp.allclose(probs_f32, ref, atol=2e-2))

    print("KERNEL_OK")
</pallas_src>

<mosaic_0001>
module attributes {stable_mosaic.version = 11 : i64} {
  func.func @_mn_infer_kernel(%arg0: i32, %arg1: memref<8x1xi32, #tpu.memory_space<vmem>>, %arg2: memref<128x128xbf16, #tpu.memory_space<vmem>>, %arg3: memref<128x128xbf16, #tpu.memory_space<vmem>>, %arg4: memref<1x128xf32, #tpu.memory_space<vmem>>, %arg5: memref<128x128xbf16, #tpu.memory_space<vmem>>, %arg6: memref<1x128xf32, #tpu.memory_space<vmem>>, %arg7: memref<8x128xbf16, #tpu.memory_space<vmem>>, %arg8: memref<8x1xi32, #tpu.memory_space<vmem>>) attributes {dimension_semantics = [#tpu.dimension_semantics<parallel>], iteration_bounds = array<i64: 2>, scalar_prefetch = 0 : i64, scratch_operands = 0 : i64, tpu.core_type = #tpu.core_type<tc>, window_params = [{transform_indices = @transform_0, window_bounds = array<i64: 8, 1>}, {pipeline_mode = #tpu.pipeline_mode<synchronous>, transform_indices = @transform_1, window_bounds = array<i64: 128, 128>}, {pipeline_mode = #tpu.pipeline_mode<synchronous>, transform_indices = @transform_2, window_bounds = array<i64: 128, 128>}, {pipeline_mode = #tpu.pipeline_mode<synchronous>, transform_indices = @transform_3, window_bounds = array<i64: 1, 128>}, {pipeline_mode = #tpu.pipeline_mode<synchronous>, transform_indices = @transform_4, window_bounds = array<i64: 128, 128>}, {pipeline_mode = #tpu.pipeline_mode<synchronous>, transform_indices = @transform_5, window_bounds = array<i64: 1, 128>}, {transform_indices = @transform_6, window_bounds = array<i64: 8, 128>}, {transform_indices = @transform_7, window_bounds = array<i64: 8, 1>}]} {
    %c0 = arith.constant 0 : index
    %c0_0 = arith.constant 0 : index
    %0 = vector.load %arg1[%c0, %c0_0] : memref<8x1xi32, #tpu.memory_space<vmem>>, vector<8x1xi32>
    %1 = tpu.iota {dimensions = array<i32: 1>} : vector<8x128xi32>
    %2 = vector.broadcast %0 : vector<8x1xi32> to vector<8x128xi32>
    %3 = arith.cmpi eq, %1, %2 : vector<8x128xi32>
    %4 = arith.extui %3 : vector<8x128xi1> to vector<8x128xi32>
    %5 = arith.sitofp %4 : vector<8x128xi32> to vector<8x128xf32>
    %6 = arith.truncf %5 : vector<8x128xf32> to vector<8x128xbf16>
    %c0_1 = arith.constant 0 : index
    %c0_2 = arith.constant 0 : index
    %7 = vector.load %arg2[%c0_1, %c0_2] : memref<128x128xbf16, #tpu.memory_space<vmem>>, vector<128x128xbf16>
    %cst = arith.constant dense<0.000000e+00> : vector<8x128xf32>
    %8 = tpu.matmul %6, %7, %cst {dimension_numbers = #tpu.dot_dimension_numbers<[1], [0], [0], [1], [0, 0, 1, 1], [], []>} : vector<8x128xbf16>, vector<128x128xbf16>, vector<8x128xf32> -> vector<8x128xf32>
    %9 = arith.truncf %8 : vector<8x128xf32> to vector<8x128xbf16>
    %c0_3 = arith.constant 0 : index
    %c0_4 = arith.constant 0 : index
    %10 = vector.load %arg3[%c0_3, %c0_4] : memref<128x128xbf16, #tpu.memory_space<vmem>>, vector<128x128xbf16>
    %cst_5 = arith.constant dense<0.000000e+00> : vector<8x128xf32>
    %11 = tpu.matmul %9, %10, %cst_5 {dimension_numbers = #tpu.dot_dimension_numbers<[1], [0], [0], [1], [0, 0, 1, 1], [], []>} : vector<8x128xbf16>, vector<128x128xbf16>, vector<8x128xf32> -> vector<8x128xf32>
    %c0_6 = arith.constant 0 : index
    %c0_7 = arith.constant 0 : index
    %12 = vector.load %arg4[%c0_6, %c0_7] : memref<1x128xf32, #tpu.memory_space<vmem>>, vector<1x128xf32>
    %13 = vector.broadcast %12 : vector<1x128xf32> to vector<8x128xf32>
    %14 = arith.addf %11, %13 : vector<8x128xf32>
    %15 = math.tanh %14 : vector<8x128xf32>
    %16 = arith.truncf %15 : vector<8x128xf32> to vector<8x128xbf16>
    %c0_8 = arith.constant 0 : index
    %c0_9 = arith.constant 0 : index
    %17 = vector.load %arg5[%c0_8, %c0_9] : memref<128x128xbf16, #tpu.memory_space<vmem>>, vector<128x128xbf16>
    %cst_10 = arith.constant dense<0.000000e+00> : vector<8x128xf32>
    %18 = tpu.matmul %16, %17, %cst_10 {dimension_numbers = #tpu.dot_dimension_numbers<[1], [0], [0], [1], [0, 0, 1, 1], [], []>} : vector<8x128xbf16>, vector<128x128xbf16>, vector<8x128xf32> -> vector<8x128xf32>
    %c0_11 = arith.constant 0 : index
    %c0_12 = arith.constant 0 : index
    %19 = vector.load %arg6[%c0_11, %c0_12] : memref<1x128xf32, #tpu.memory_space<vmem>>, vector<1x128xf32>
    %20 = vector.broadcast %19 : vector<1x128xf32> to vector<8x128xf32>
    %21 = arith.addf %18, %20 : vector<8x128xf32>
    %cst_13 = arith.constant dense<0xFF800000> : vector<8xf32>
    %22 = vector.multi_reduction <maximumf>, %21, %cst_13 [1] : vector<8x128xf32> to vector<8xf32>
    %23 = vector.shape_cast %22 : vector<8xf32> to vector<8x1xf32>
    %24 = vector.broadcast %23 : vector<8x1xf32> to vector<8x128xf32>
    %25 = arith.subf %21, %24 : vector<8x128xf32>
    %26 = math.exp %25 : vector<8x128xf32>
    %cst_14 = arith.constant dense<0.000000e+00> : vector<8xf32>
    %27 = vector.multi_reduction <add>, %26, %cst_14 [1] : vector<8x128xf32> to vector<8xf32>
    %28 = vector.shape_cast %27 : vector<8xf32> to vector<8x1xf32>
    %29 = tpu.reciprocal %28 {approx = true} : vector<8x1xf32> -> vector<8x1xf32>
    %30 = vector.broadcast %29 : vector<8x1xf32> to vector<8x128xf32>
    %31 = arith.mulf %26, %30 : vector<8x128xf32>
    %32 = arith.truncf %31 : vector<8x128xf32> to vector<8x128xbf16>
    %c0_15 = arith.constant 0 : index
    %c0_16 = arith.constant 0 : index
    %33 = vector.load %arg7[%c0_15, %c0_16] : memref<8x128xbf16, #tpu.memory_space<vmem>>, vector<8x128xbf16>
    tpu.vector_store %arg7[%c0_15, %c0_16], %32 {strides = array<i32>} : memref<8x128xbf16, #tpu.memory_space<vmem>>, vector<8x128xbf16>,
    %34 = tpu.iota {dimensions = array<i32: 1>} : vector<8x128xi32>
    %35 = vector.broadcast %23 : vector<8x1xf32> to vector<8x128xf32>
    %36 = arith.cmpf oeq, %21, %35 : vector<8x128xf32>
    %c128_i32 = arith.constant 128 : i32
    %37 = vector.broadcast %c128_i32 : i32 to vector<8x128xi32>
    %38 = arith.select %36, %34, %37 : vector<8x128xi1>, vector<8x128xi32>
    %cst_17 = arith.constant dense<2147483647> : vector<8xi32>
    %39 = vector.multi_reduction <minsi>, %38, %cst_17 [1] : vector<8x128xi32> to vector<8xi32>
    %40 = vector.shape_cast %39 : vector<8xi32> to vector<8x1xi32>
    %c0_18 = arith.constant 0 : index
    %c0_19 = arith.constant 0 : index
    %41 = vector.load %arg8[%c0_18, %c0_19] : memref<8x1xi32, #tpu.memory_space<vmem>>, vector<8x1xi32>
    tpu.vector_store %arg8[%c0_18, %c0_19], %40 {strides = array<i32>} : memref<8x1xi32, #tpu.memory_space<vmem>>, vector<8x1xi32>,
    return
  }
  func.func @transform_0(%arg0: i32) -> (i32, i32) {
    %c0_i32 = arith.constant 0 : i32
    %c0_i32_0 = arith.constant 0 : i32
    return %arg0, %c0_i32 : i32, i32
  }
  func.func @transform_1(%arg0: i32) -> (i32, i32) {
    %c0_i32 = arith.constant 0 : i32
    %c0_i32_0 = arith.constant 0 : i32
    %c0_i32_1 = arith.constant 0 : i32
    return %c0_i32, %c0_i32_0 : i32, i32
  }
  func.func @transform_2(%arg0: i32) -> (i32, i32) {
    %c0_i32 = arith.constant 0 : i32
    %c0_i32_0 = arith.constant 0 : i32
    %c0_i32_1 = arith.constant 0 : i32
    return %c0_i32, %c0_i32_0 : i32, i32
  }
  func.func @transform_3(%arg0: i32) -> (i32, i32) {
    %c0_i32 = arith.constant 0 : i32
    %c0_i32_0 = arith.constant 0 : i32
    %c0_i32_1 = arith.constant 0 : i32
    return %c0_i32, %c0_i32_0 : i32, i32
  }
  func.func @transform_4(%arg0: i32) -> (i32, i32) {
    %c0_i32 = arith.constant 0 : i32
    %c0_i32_0 = arith.constant 0 : i32
    %c0_i32_1 = arith.constant 0 : i32
    return %c0_i32, %c0_i32_0 : i32, i32
  }
  func.func @transform_5(%arg0: i32) -> (i32, i32) {
    %c0_i32 = arith.constant 0 : i32
    %c0_i32_0 = arith.constant 0 : i32
    %c0_i32_1 = arith.constant 0 : i32
    return %c0_i32, %c0_i32_0 : i32, i32
  }
  func.func @transform_6(%arg0: i32) -> (i32, i32) {
    %c0_i32 = arith.constant 0 : i32
    %c0_i32_0 = arith.constant 0 : i32
    return %arg0, %c0_i32 : i32, i32
  }
  func.func @transform_7(%arg0: i32) -> (i32, i32) {
    %c0_i32 = arith.constant 0 : i32
    %c0_i32_0 = arith.constant 0 : i32
    return %arg0, %c0_i32 : i32, i32
  }
}

</mosaic_0001>

<llo_original>
// kernel: tpu_custom_call.1
$region0: #{tpu_custom_call.1}
  #allocation0 [shape = 'u32[]', space=smem, size = 0x4, offset = 0x4, fixed_abs, tag = 'smem constant byte address 0x4 - core index']
  #allocation1 [shape = 'u32[144,128]{1,0:T(1,128)}', space=vmem, size = 0x12000, scoped, tag = 'internal scratch']
  %s0 = inlined_call_operand.vmem [shape: s32[16,1], index: 0, kind: input, shape index: {}]
  %s1 = inlined_call_operand.hbm [shape: bf16[128,128], index: 1, kind: input, shape index: {}]
  %s2 = inlined_call_operand.hbm [shape: bf16[128,128], index: 2, kind: input, shape index: {}]
  %s3 = inlined_call_operand.vmem [shape: f32[1,128], index: 3, kind: input, shape index: {}]
  %s4 = inlined_call_operand.hbm [shape: bf16[128,128], index: 4, kind: input, shape index: {}]
  %s5 = inlined_call_operand.vmem [shape: f32[1,128], index: 5, kind: input, shape index: {}]
  %s6 = inlined_call_operand.hbm [shape: bf16[16,128], index: 6, kind: output, shape index: {0}]
  %s7 = inlined_call_operand.vmem [shape: s32[16,1], index: 7, kind: output, shape index: {1}]
  %8 = xla_tuple %s6, %s7
  %s9 = sld [smem:[#allocation0]]
  $region77: #{tpu_custom_call.1} parent=0
    _
  %s11 = ssub.s32 1, %s9
  %s12 = scalar_select 0, %s11, %s9
  $region1: #{tpu_custom_call.1} parent=0
    #allocation2 [shape = 'u8[32768]{0}', space=vmem, size = 0x8000, scoped, tag = 'input window, operand 1, single buffered']
    #allocation3 [shape = 's32[2]{0}', space=sflag, size = 0x8, scoped, tag = 'scoped memory for tpu_custom_call.1']
    #allocation4 [shape = 's32[2]{0}', space=sflag, size = 0x8, scoped, tag = 'scoped memory for tpu_custom_call.1']
    #allocation5 [shape = 'u8[32768]{0}', space=vmem, size = 0x8000, scoped, tag = 'input window, operand 2, single buffered']
    #allocation6 [shape = 's32[1]{0}', space=sflag, size = 0x4, scoped, tag = 'scoped memory for tpu_custom_call.1']
    #allocation7 [shape = 'u8[32768]{0}', space=vmem, size = 0x8000, scoped, tag = 'input window, operand 4, single buffered']
    #allocation8 [shape = 'u8[4096]{0}', space=vmem, size = 0x1000, scoped, tag = 'output window, operand 0']
    %13 = vsyncpa [#allocation3], 0
    %14 = vsyncpa [#allocation6], 0
    %15 = vsyncpa [#allocation4], 0
    %s16 = scalar_lea.sflag [#allocation4], 1
    %17 = vsyncpa %s16, 0
    loop: start=0, step=1, limit=4
    $region2: #{tpu_custom_call.1} parent=1 // loop_pre_header
      _
    $region3: #{tpu_custom_call.1} parent=1 // loop_header
      %s19 = sphi 0, %s23
      %p20 = scmp.ge.s32.totalorder %s19, 4
      %s29 = sphi 0, %s31
      %s32 = sphi 0, %s29
      %s33 = sphi 0, %s32
      %s49 = sphi 0, %s33
      %s53 = sphi 0, %s53
      %s55 = sphi 0, %s53
      %s56 = sphi 0, %s55
      %s70 = sphi 0, %s56
      %s74 = sphi 0, %s74
      %s76 = sphi 0, %s74
      %s77 = sphi 0, %s76
      %s91 = sphi 0, %s77
      %s95 = sphi 0, %s95
      %s97 = sphi 0, %s95
      %s98 = sphi 0, %s97
      %s112 = sphi 0, %s98
      %s116 = sphi 0, %s116
      %s118 = sphi 0, %s116
      %s119 = sphi 0, %s118
      %s133 = sphi 0, %s119
      %s137 = sphi 0, %s137
      %s139 = sphi 0, %s137
      %s140 = sphi 0, %s139
      %s154 = sphi 0, %s140
      %s160 = sphi 0, %s162
      %s163 = sphi 0, %s160
      %s164 = sphi 0, %s163
      %s180 = sphi 0, %s164
      %s186 = sphi 0, %s188
      %s189 = sphi 0, %s186
      %s190 = sphi 0, %s189
      %s206 = sphi 0, %s190
    $region4: #{tpu_custom_call.1} parent=1 // loop_header_branch
      %22 = sbr.rel (%p20) target = $region8
    $region5: #{tpu_custom_call.1} parent=1 // loop_body
      %s24 = ssub.s32 %s19, 1
      %s25 = ssub.s32 %s19, 2
      %s26 = sadd.s32 %s19, 1
      %s27 = ssub.s32 %s19, %s26
      %p28 = scmp.eq.s32.totalorder %s27, 0
      %s30 = sadd.s32 %s29, 1
      %s31 = scalar_select %p28, %s29, %s30
      %p34 = pneg %p28
      %p35 = scmp.eq.s32.totalorder %s19, 1
      %p36 = por %p34, %p35
      %p37 = scmp.ne.s32.totalorder %s29, %s32
      %p38 = scmp.eq.s32.totalorder %s19, 0
      %p39 = por %p37, %p38
      %p40 = scmp.ne.s32.totalorder %s29, %s32
      %p41 = scmp.eq.s32.totalorder %s24, 1
      %p42 = por %p40, %p41
      %p43 = scmp.ne.s32.totalorder %s32, %s33
      %p44 = scmp.eq.s32.totalorder %s24, 0
      %p45 = por %p43, %p44
      %p46 = scmp.ne.s32.totalorder %s32, %s33
      %p47 = scmp.eq.s32.totalorder %s25, 1
      %p48 = por %p46, %p47
      %p50 = scmp.ne.s32.totalorder %s33, %s49
      %p51 = scmp.eq.s32.totalorder %s25, 0
      %p52 = por %p50, %p51
      %s54 = sadd.s32 %s53, 1
      %p57 = scmp.eq.s32.totalorder %s19, 1
      %p58 = scmp.ne.s32.totalorder %s53, %s55
      %p59 = scmp.eq.s32.totalorder %s19, 0
      %p60 = por %p58, %p59
      %p61 = scmp.ne.s32.totalorder %s53, %s55
      %p62 = scmp.eq.s32.totalorder %s24, 1
      %p63 = por %p61, %p62
      %p64 = scmp.ne.s32.totalorder %s55, %s56
      %p65 = scmp.eq.s32.totalorder %s24, 0
      %p66 = por %p64, %p65
      %p67 = scmp.ne.s32.totalorder %s55, %s56
      %p68 = scmp.eq.s32.totalorder %s25, 1
      %p69 = por %p67, %p68
      %p71 = scmp.ne.s32.totalorder %s56, %s70
      %p72 = scmp.eq.s32.totalorder %s25, 0
      %p73 = por %p71, %p72
      %s75 = sadd.s32 %s74, 1
      %p78 = scmp.eq.s32.totalorder %s19, 1
      %p79 = scmp.ne.s32.totalorder %s74, %s76
      %p80 = scmp.eq.s32.totalorder %s19, 0
      %p81 = por %p79, %p80
      %p82 = scmp.ne.s32.totalorder %s74, %s76
      %p83 = scmp.eq.s32.totalorder %s24, 1
      %p84 = por %p82, %p83
      %p85 = scmp.ne.s32.totalorder %s76, %s77
      %p86 = scmp.eq.s32.totalorder %s24, 0
      %p87 = por %p85, %p86
      %p88 = scmp.ne.s32.totalorder %s76, %s77
      %p89 = scmp.eq.s32.totalorder %s25, 1
      %p90 = por %p88, %p89
      %p92 = scmp.ne.s32.totalorder %s77, %s91
      %p93 = scmp.eq.s32.totalorder %s25, 0
      %p94 = por %p92, %p93
      %s96 = sadd.s32 %s95, 1
      %p99 = scmp.eq.s32.totalorder %s19, 1
      %p100 = scmp.ne.s32.totalorder %s95, %s97
      %p101 = scmp.eq.s32.totalorder %s19, 0
      %p102 = por %p100, %p101
      %p103 = scmp.ne.s32.totalorder %s95, %s97
      %p104 = scmp.eq.s32.totalorder %s24, 1
      %p105 = por %p103, %p104
      %p106 = scmp.ne.s32.totalorder %s97, %s98
      %p107 = scmp.eq.s32.totalorder %s24, 0
      %p108 = por %p106, %p107
      %p109 = scmp.ne.s32.totalorder %s97, %s98
      %p110 = scmp.eq.s32.totalorder %s25, 1
      %p111 = por %p109, %p110
      %p113 = scmp.ne.s32.totalorder %s98, %s112
      %p114 = scmp.eq.s32.totalorder %s25, 0
      %p115 = por %p113, %p114
      %s117 = sadd.s32 %s116, 1
      %p120 = scmp.eq.s32.totalorder %s19, 1
      %p121 = scmp.ne.s32.totalorder %s116, %s118
      %p122 = scmp.eq.s32.totalorder %s19, 0
      %p123 = por %p121, %p122
      %p124 = scmp.ne.s32.totalorder %s116, %s118
      %p125 = scmp.eq.s32.totalorder %s24, 1
      %p126 = por %p124, %p125
      %p127 = scmp.ne.s32.totalorder %s118, %s119
      %p128 = scmp.eq.s32.totalorder %s24, 0
      %p129 = por %p127, %p128
      %p130 = scmp.ne.s32.totalorder %s118, %s119
      %p131 = scmp.eq.s32.totalorder %s25, 1
      %p132 = por %p130, %p131
      %p134 = scmp.ne.s32.totalorder %s119, %s133
      %p135 = scmp.eq.s32.totalorder %s25, 0
      %p136 = por %p134, %p135
      %s138 = sadd.s32 %s137, 1
      %p141 = scmp.eq.s32.totalorder %s19, 1
      %p142 = scmp.ne.s32.totalorder %s137, %s139
      %p143 = scmp.eq.s32.totalorder %s19, 0
      %p144 = por %p142, %p143
      %p145 = scmp.ne.s32.totalorder %s137, %s139
      %p146 = scmp.eq.s32.totalorder %s24, 1
      %p147 = por %p145, %p146
      %p148 = scmp.ne.s32.totalorder %s139, %s140
      %p149 = scmp.eq.s32.totalorder %s24, 0
      %p150 = por %p148, %p149
      %p151 = scmp.ne.s32.totalorder %s139, %s140
      %p152 = scmp.eq.s32.totalorder %s25, 1
      %p153 = por %p151, %p152
      %p155 = scmp.ne.s32.totalorder %s140, %s154
      %p156 = scmp.eq.s32.totalorder %s25, 0
      %p157 = por %p155, %p156
      %s158 = ssub.s32 %s19, %s26
      %p159 = scmp.eq.s32.totalorder %s158, 0
      %s161 = sadd.s32 %s160, 1
      %s162 = scalar_select %p159, %s160, %s161
      %p165 = pneg %p159
      %p166 = scmp.eq.s32.totalorder %s19, 1
      %p167 = por %p165, %p166
      %p168 = scmp.ne.s32.totalorder %s160, %s163
      %p169 = scmp.eq.s32.totalorder %s19, 0
      %p170 = por %p168, %p169
      %p171 = scmp.ne.s32.totalorder %s160, %s163
      %p172 = scmp.eq.s32.totalorder %s24, 1
      %p173 = por %p171, %p172
      %p174 = scmp.ne.s32.totalorder %s163, %s164
      %p175 = scmp.eq.s32.totalorder %s24, 0
      %p176 = por %p174, %p175
      %p177 = scmp.ne.s32.totalorder %s163, %s164
      %p178 = scmp.eq.s32.totalorder %s25, 1
      %p179 = por %p177, %p178
      %p181 = scmp.ne.s32.totalorder %s164, %s180
      %p182 = scmp.eq.s32.totalorder %s25, 0
      %p183 = por %p181, %p182
      %s184 = ssub.s32 %s19, %s26
      %p185 = scmp.eq.s32.totalorder %s184, 0
      %s187 = sadd.s32 %s186, 1
      %s188 = scalar_select %p185, %s186, %s187
      %p191 = pneg %p185
      %p192 = scmp.eq.s32.totalorder %s19, 1
      %p193 = por %p191, %p192
      %p194 = scmp.ne.s32.totalorder %s186, %s189
      %p195 = scmp.eq.s32.totalorder %s19, 0
      %p196 = por %p194, %p195
      %p197 = scmp.ne.s32.totalorder %s186, %s189
      %p198 = scmp.eq.s32.totalorder %s24, 1
      %p199 = por %p197, %p198
      %p200 = scmp.ne.s32.totalorder %s189, %s190
      %p201 = scmp.eq.s32.totalorder %s24, 0
      %p202 = por %p200, %p201
      %p203 = scmp.ne.s32.totalorder %s189, %s190
      %p204 = scmp.eq.s32.totalorder %s25, 1
      %p205 = por %p203, %p204
      %p207 = scmp.ne.s32.totalorder %s190, %s206
      %p208 = scmp.eq.s32.totalorder %s25, 0
      %p209 = por %p207, %p208
      %p210 = scmp.le.s32.totalorder 1, %s19
      %p211 = scmp.lt.s32.totalorder %s19, 3
      %p212 = pnand %p210, %p211
      %p213 = pneg %p212
      // Predicated region
      $region9: #{tpu_custom_call.1} parent=5 // pred_check
        _
      $region10: #{tpu_custom_call.1} parent=5 // pred_check_branch
        %215 = sbr.rel (%p212) target = $region12
      $region11: #{tpu_custom_call.1} parent=5 // pred_region
        %s216 = ssub.s32 %s19, 1
        // Predicated region
        $region13: #{tpu_custom_call.1} parent=11 // pred_check
          %p217 = pneg %p66
        $region14: #{tpu_custom_call.1} parent=11 // pred_check_branch
          %219 = sbr.rel (%p217) target = $region16
        $region15: #{tpu_custom_call.1} parent=11 // pred_region
          %s221 = ssub.s32 1024, 1024
          %222 = vsyncadd [#allocation3], %s221
          %s223 = sshll.u32 [#allocation2], 4
          %s224 = int_to_ptr.vmem [resolvable:$true] %s223
          %229 = dma.hbm_to_vmem [thread:$0]  %s1, 1024, %s224, [#allocation3], 64, 64, 4
        $region16: #{tpu_custom_call.1} parent=11 // pred_fallthru
          _
        // Predicated region
        $region17: #{tpu_custom_call.1} parent=11 // pred_check
          %p230 = pneg %p87
        $region18: #{tpu_custom_call.1} parent=11 // pred_check_branch
          %232 = sbr.rel (%p230) target = $region20
        $region19: #{tpu_custom_call.1} parent=11 // pred_region
          %s234 = ssub.s32 1024, 1024
          %235 = vsyncadd [#allocation6], %s234
          %s236 = sshll.u32 [#allocation5], 4
          %s237 = int_to_ptr.vmem [resolvable:$true] %s236
          %242 = dma.hbm_to_vmem [thread:$0]  %s2, 1024, %s237, [#allocation6], 64, 64, 4
        $region20: #{tpu_custom_call.1} parent=11 // pred_fallthru
          _
        // Predicated region
        $region21: #{tpu_custom_call.1} parent=11 // pred_check
          %p243 = pneg %p108
        $region22: #{tpu_custom_call.1} parent=11 // pred_check_branch
          %245 = sbr.rel (%p243) target = $region24
        $region23: #{tpu_custom_call.1} parent=11 // pred_region
          _
        $region24: #{tpu_custom_call.1} parent=11 // pred_fallthru
          _
        // Predicated region
        $region25: #{tpu_custom_call.1} parent=11 // pred_check
          %p246 = pneg %p129
        $region26: #{tpu_custom_call.1} parent=11 // pred_check_branch
          %248 = sbr.rel (%p246) target = $region28
        $region27: #{tpu_custom_call.1} parent=11 // pred_region
          %s250 = ssub.s32 1024, 1024
          %251 = vsyncadd [#allocation6], %s250
          %s252 = sshll.u32 [#allocation7], 4
          %s253 = int_to_ptr.vmem [resolvable:$true] %s252
          %258 = dma.hbm_to_vmem [thread:$0]  %s4, 1024, %s253, [#allocation6], 64, 64, 4
        $region28: #{tpu_custom_call.1} parent=11 // pred_fallthru
          _
        // Predicated region
        $region29: #{tpu_custom_call.1} parent=11 // pred_check
          %p259 = pneg %p150
        $region30: #{tpu_custom_call.1} parent=11 // pred_check_branch
          %261 = sbr.rel (%p259) target = $region32
        $region31: #{tpu_custom_call.1} parent=11 // pred_region
          _
        $region32: #{tpu_custom_call.1} parent=11 // pred_fallthru
          _
      $region12: #{tpu_custom_call.1} parent=5 // pred_fallthru
        _
      %p262 = scmp.lt.s32.totalorder %s19, 2
      // Predicated region
      $region33: #{tpu_custom_call.1} parent=5 // pred_check
        %p263 = pneg %p262
      $region34: #{tpu_custom_call.1} parent=5 // pred_check_branch
        %265 = sbr.rel (%p263) target = $region36
      $region35: #{tpu_custom_call.1} parent=5 // pred_region
        // Predicated region
        $region37: #{tpu_custom_call.1} parent=35 // pred_check
          %p266 = pneg %p39
        $region38: #{tpu_custom_call.1} parent=35 // pred_check_branch
          %268 = sbr.rel (%p266) target = $region40
        $region39: #{tpu_custom_call.1} parent=35 // pred_region
          %p269 = scmp.lt.s32.totalorder %s19, 1
          %s270 = scalar_select %p269, %s19, 1
          %s271 = smul.addr %s270, 8
          %s272 = scalar_lea.vmem %s0, %s271
        $region40: #{tpu_custom_call.1} parent=35 // pred_fallthru
          _
      $region36: #{tpu_custom_call.1} parent=5 // pred_fallthru
        _
      %p273 = scmp.le.s32.totalorder 1, %s19
      %p274 = scmp.lt.s32.totalorder %s19, 3
      %p275 = pnand %p273, %p274
      %p276 = pneg %p275
      // Predicated region
      $region41: #{tpu_custom_call.1} parent=5 // pred_check
        _
      $region42: #{tpu_custom_call.1} parent=5 // pred_check_branch
        %278 = sbr.rel (%p275) target = $region44
      $region43: #{tpu_custom_call.1} parent=5 // pred_region
        %s279 = ssub.s32 %s19, 1
        // Predicated region
        $region45: #{tpu_custom_call.1} parent=43 // pred_check
          %p280 = pneg %p66
        $region46: #{tpu_custom_call.1} parent=43 // pred_check_branch
          %282 = sbr.rel (%p280) target = $region48
        $region47: #{tpu_custom_call.1} parent=43 // pred_region
          %283 = dma.done [#allocation3], 1024
        $region48: #{tpu_custom_call.1} parent=43 // pred_fallthru
          _
        // Predicated region
        $region49: #{tpu_custom_call.1} parent=43 // pred_check
          %p284 = pneg %p87
        $region50: #{tpu_custom_call.1} parent=43 // pred_check_branch
          %286 = sbr.rel (%p284) target = $region52
        $region51: #{tpu_custom_call.1} parent=43 // pred_region
          %287 = dma.done [#allocation6], 1024
        $region52: #{tpu_custom_call.1} parent=43 // pred_fallthru
          _
        // Predicated region
        $region53: #{tpu_custom_call.1} parent=43 // pred_check
          %p288 = pneg %p129
        $region54: #{tpu_custom_call.1} parent=43 // pred_check_branch
          %290 = sbr.rel (%p288) target = $region56
        $region55: #{tpu_custom_call.1} parent=43 // pred_region
          %291 = dma.done [#allocation6], 1024
        $region56: #{tpu_custom_call.1} parent=43 // pred_fallthru
          _
        %p292 = scmp.lt.s32.totalorder %s24, 1
        %s293 = scalar_select %p292, %s24, 1
        %s294 = smul.addr %s293, 8
        %s295 = scalar_lea.vmem %s0, %s294
        %p296 = pneg %p45
        %p297 = pneg %p42
        %p298 = pneg %p66
        %p299 = pneg %p63
        %p300 = pneg %p87
        %p301 = pneg %p84
        %p302 = pneg %p108
        %p303 = pneg %p105
        %p304 = pneg %p129
        %p305 = pneg %p126
        %p306 = pneg %p150
        %p307 = pneg %p147
        %p308 = pneg %p176
        %p309 = pneg %p173
        %s310 = sand.u32 %s163, 1
        %s311 = scalar_lea.sflag [#allocation4], %s310
        %s312 = sand.u32 %s163, 1
        %s313 = smul.addr %s312, 4
        %s314 = scalar_lea.vmem [#allocation8], %s313
        %p315 = pneg %p202
        %p316 = pneg %p199
        %p317 = scmp.lt.s32.totalorder %s24, 1
        %s318 = scalar_select %p317, %s24, 1
        %s319 = smul.addr %s318, 8
        %s320 = scalar_lea.vmem %s7, %s319
        %p321 = scmp.lt.s32.totalorder %s24, 1
        %s322 = scalar_select %p321, %s24, 1
        %s323 = smul.addr %s322, 8
        %s324 = scalar_lea.vmem %s0, %s323
        %p325 = scmp.lt.s32.totalorder %s24, 1
        %s326 = scalar_select %p325, %s24, 1
        %s327 = smul.addr %s326, 8
        %s328 = scalar_lea.vmem %s7, %s327
        %v330 = vld [vmem:[%s324] sm:$0xff]
        %v331 = vlaneseq
        %v332 = vand.u32 %v331, 127
        %333 = vset.pattern.permute.xlu0 0
        %334 = vperm.xlu0 %333, %v330
        %v335 = vpop.permute.xlu0 %334
        %vm336 = vcmp.eq.s32.totalorder %v332, %v335
        %v337 = vsel %vm336, 1, 0
        %v338 = vcvt.s32.f32 %v337
        %v339 = vpack.c.bf16 %v338, %v338
        %v340 = vld [vmem:[#allocation2] sm:$0xf]
        %v341 = vld [vmem:[#allocation2 + $0x4] sm:$0xf]
        %v342 = vld [vmem:[#allocation2 + $0x8] sm:$0xf]
        %v343 = vld [vmem:[#allocation2 + $0xc] sm:$0xf]
        %v344 = vld [vmem:[#allocation2 + $0x10] sm:$0xf]
        %v345 = vld [vmem:[#allocation2 + $0x14] sm:$0xf]
        %v346 = vld [vmem:[#allocation2 + $0x18] sm:$0xf]
        %v347 = vld [vmem:[#allocation2 + $0x1c] sm:$0xf]
        %v348 = vld [vmem:[#allocation2 + $0x20] sm:$0xf]
        %v349 = vld [vmem:[#allocation2 + $0x24] sm:$0xf]
        %v350 = vld [vmem:[#allocation2 + $0x28] sm:$0xf]
        %v351 = vld [vmem:[#allocation2 + $0x2c] sm:$0xf]
        %v352 = vld [vmem:[#allocation2 + $0x30] sm:$0xf]
        %v353 = vld [vmem:[#allocation2 + $0x34] sm:$0xf]
        %v354 = vld [vmem:[#allocation2 + $0x38] sm:$0xf]
        %v355 = vld [vmem:[#allocation2 + $0x3c] sm:$0xf]
        %v372 = vunpack.c.l.b16 %v340
        %v373 = vunpack.c.l.b16 %v341
        %v374 = vunpack.c.l.b16 %v342
        %v375 = vunpack.c.l.b16 %v343
        %v376 = vunpack.c.l.b16 %v344
        %v377 = vunpack.c.l.b16 %v345
        %v378 = vunpack.c.l.b16 %v346
        %v379 = vunpack.c.l.b16 %v347
        %v380 = vunpack.c.l.b16 %v348
        %v381 = vunpack.c.l.b16 %v349
        %v382 = vunpack.c.l.b16 %v350
        %v383 = vunpack.c.l.b16 %v351
        %v384 = vunpack.c.l.b16 %v352
        %v385 = vunpack.c.l.b16 %v353
        %v386 = vunpack.c.l.b16 %v354
        %v387 = vunpack.c.l.b16 %v355
        %v388 = vpack.c.b16 %v373, %v372
        %v389 = vpack.c.b16 %v375, %v374
        %v390 = vpack.c.b16 %v377, %v376
        %v391 = vpack.c.b16 %v379, %v378
        %v392 = vpack.c.b16 %v381, %v380
        %v393 = vpack.c.b16 %v383, %v382
        %v394 = vpack.c.b16 %v385, %v384
        %v395 = vpack.c.b16 %v387, %v386
        %404 = vmatprep.subr.bf16.mxu0 0
        %405 = vmatpush1.bf16.msra.mxu0 %v395
        %406 = vmatprep.subr.bf16.mxu0 0
        %407 = vmatpush1.bf16.msra.mxu0 %v394
        %408 = vmatprep.subr.bf16.mxu0 0
        %409 = vmatpush1.bf16.msra.mxu0 %v393
        %410 = vmatprep.subr.bf16.mxu0 0
        %411 = vmatpush1.bf16.msra.mxu0 %v392
        %412 = vmatprep.subr.bf16.mxu0 0
        %413 = vmatpush1.bf16.msra.mxu0 %v391
        %414 = vmatprep.subr.bf16.mxu0 0
        %415 = vmatpush1.bf16.msra.mxu0 %v390
        %416 = vmatprep.subr.bf16.mxu0 0
        %417 = vmatpush1.bf16.msra.mxu0 %v389
        %418 = vmatprep.subr.bf16.mxu0 0
        %419 = vmatpush1.bf16.msra.mxu0 %v388
        %420 = vmatprep.subr.bf16.mxu0 0
        %421 = vmatpush2.bf16.msra.mxu0 0
        %422 = vmatprep.subr.bf16.mxu0 0
        %423 = vmatpush2.bf16.msra.mxu0 0
        %424 = vmatprep.subr.bf16.mxu0 0
        %425 = vmatpush2.bf16.msra.mxu0 0
        %426 = vmatprep.subr.bf16.mxu0 0
        %427 = vmatpush2.bf16.msra.mxu0 0
        %428 = vmatprep.subr.bf16.mxu0 0
        %429 = vmatpush2.bf16.msra.mxu0 0
        %430 = vmatprep.subr.bf16.mxu0 0
        %431 = vmatpush2.bf16.msra.mxu0 0
        %432 = vmatprep.subr.bf16.mxu0 0
        %433 = vmatpush2.bf16.msra.mxu0 0
        %434 = vmatprep.subr.bf16.mxu0 0
        %435 = vmatpush2.bf16.msra.mxu0 0
        %436 = vmatprep.mubr.bf16.mxu0 0
        %437 = vmatmul.mubr.bf16.gmra.mxu0 %v339
        %v438 = vpop.f32.mrf.mxu0
        %v439 = vadd.f32 0.0, %v438
        %v440 = vpop.f32.mrf.mxu0
        %v441 = vpop.f32.mrf.mxu0
        %v442 = vpop.f32.mrf.mxu0
        %443 = vdwg.mxu0
        %v444 = vpack.c.bf16 %v439, %v439
        %v445 = vld [vmem:[#allocation5] sm:$0xf]
        %v446 = vld [vmem:[#allocation5 + $0x4] sm:$0xf]
        %v447 = vld [vmem:[#allocation5 + $0x8] sm:$0xf]
        %v448 = vld [vmem:[#allocation5 + $0xc] sm:$0xf]
        %v449 = vld [vmem:[#allocation5 + $0x10] sm:$0xf]
        %v450 = vld [vmem:[#allocation5 + $0x14] sm:$0xf]
        %v451 = vld [vmem:[#allocation5 + $0x18] sm:$0xf]
        %v452 = vld [vmem:[#allocation5 + $0x1c] sm:$0xf]
        %v453 = vld [vmem:[#allocation5 + $0x20] sm:$0xf]
        %v454 = vld [vmem:[#allocation5 + $0x24] sm:$0xf]
        %v455 = vld [vmem:[#allocation5 + $0x28] sm:$0xf]
        %v456 = vld [vmem:[#allocation5 + $0x2c] sm:$0xf]
        %v457 = vld [vmem:[#allocation5 + $0x30] sm:$0xf]
        %v458 = vld [vmem:[#allocation5 + $0x34] sm:$0xf]
        %v459 = vld [vmem:[#allocation5 + $0x38] sm:$0xf]
        %v460 = vld [vmem:[#allocation5 + $0x3c] sm:$0xf]
        %v461 = vld [vmem:[%s3] sm:$0x1]
        %v463 = vlaneseq
        %v464 = vshrl.u32 %v463, 7
        %v465 = vsub.s32 0, %v464
        %v466 = vrot.slane %v461, %v465
        %v484 = vunpack.c.l.b16 %v445
        %v485 = vunpack.c.l.b16 %v446
        %v486 = vunpack.c.l.b16 %v447
        %v487 = vunpack.c.l.b16 %v448
        %v488 = vunpack.c.l.b16 %v449
        %v489 = vunpack.c.l.b16 %v450
        %v490 = vunpack.c.l.b16 %v451
        %v491 = vunpack.c.l.b16 %v452
        %v492 = vunpack.c.l.b16 %v453
        %v493 = vunpack.c.l.b16 %v454
        %v494 = vunpack.c.l.b16 %v455
        %v495 = vunpack.c.l.b16 %v456
        %v496 = vunpack.c.l.b16 %v457
        %v497 = vunpack.c.l.b16 %v458
        %v498 = vunpack.c.l.b16 %v459
        %v499 = vunpack.c.l.b16 %v460
        %v500 = vpack.c.b16 %v485, %v484
        %v501 = vpack.c.b16 %v487, %v486
        %v502 = vpack.c.b16 %v489, %v488
        %v503 = vpack.c.b16 %v491, %v490
        %v504 = vpack.c.b16 %v493, %v492
        %v505 = vpack.c.b16 %v495, %v494
        %v506 = vpack.c.b16 %v497, %v496
        %v507 = vpack.c.b16 %v499, %v498
        %516 = vmatprep.subr.bf16.mxu0 0
        %517 = vmatpush1.bf16.msra.mxu0 %v507
        %518 = vmatprep.subr.bf16.mxu0 0
        %519 = vmatpush1.bf16.msra.mxu0 %v506
        %520 = vmatprep.subr.bf16.mxu0 0
        %521 = vmatpush1.bf16.msra.mxu0 %v505
        %522 = vmatprep.subr.bf16.mxu0 0
        %523 = vmatpush1.bf16.msra.mxu0 %v504
        %524 = vmatprep.subr.bf16.mxu0 0
        %525 = vmatpush1.bf16.msra.mxu0 %v503
        %526 = vmatprep.subr.bf16.mxu0 0
        %527 = vmatpush1.bf16.msra.mxu0 %v502
        %528 = vmatprep.subr.bf16.mxu0 0
        %529 = vmatpush1.bf16.msra.mxu0 %v501
        %530 = vmatprep.subr.bf16.mxu0 0
        %531 = vmatpush1.bf16.msra.mxu0 %v500
        %532 = vmatprep.subr.bf16.mxu0 0
        %533 = vmatpush2.bf16.msra.mxu0 0
        %534 = vmatprep.subr.bf16.mxu0 0
        %535 = vmatpush2.bf16.msra.mxu0 0
        %536 = vmatprep.subr.bf16.mxu0 0
        %537 = vmatpush2.bf16.msra.mxu0 0
        %538 = vmatprep.subr.bf16.mxu0 0
        %539 = vmatpush2.bf16.msra.mxu0 0
        %540 = vmatprep.subr.bf16.mxu0 0
        %541 = vmatpush2.bf16.msra.mxu0 0
        %542 = vmatprep.subr.bf16.mxu0 0
        %543 = vmatpush2.bf16.msra.mxu0 0
        %544 = vmatprep.subr.bf16.mxu0 0
        %545 = vmatpush2.bf16.msra.mxu0 0
        %546 = vmatprep.subr.bf16.mxu0 0
        %547 = vmatpush2.bf16.msra.mxu0 0
        %548 = vmatprep.mubr.bf16.mxu0 0
        %549 = vmatmul.mubr.bf16.gmra.mxu0 %v444
        %v550 = vpop.f32.mrf.mxu0
        %v551 = vadd.f32 %v466, %v550
        %v552 = vpop.f32.mrf.mxu0
        %v553 = vpop.f32.mrf.mxu0
        %v554 = vpop.f32.mrf.mxu0
        %555 = vdwg.mxu0
        %v556 = vtanh.pop %v551
        %v557 = vpack.c.bf16 %v556, %v556
        %v558 = vld [vmem:[#allocation7] sm:$0xf]
        %v559 = vld [vmem:[#allocation7 + $0x4] sm:$0xf]
        %v560 = vld [vmem:[#allocation7 + $0x8] sm:$0xf]
        %v561 = vld [vmem:[#allocation7 + $0xc] sm:$0xf]
        %v562 = vld [vmem:[#allocation7 + $0x10] sm:$0xf]
        %v563 = vld [vmem:[#allocation7 + $0x14] sm:$0xf]
        %v564 = vld [vmem:[#allocation7 + $0x18] sm:$0xf]
        %v565 = vld [vmem:[#allocation7 + $0x1c] sm:$0xf]
        %v566 = vld [vmem:[#allocation7 + $0x20] sm:$0xf]
        %v567 = vld [vmem:[#allocation7 + $0x24] sm:$0xf]
        %v568 = vld [vmem:[#allocation7 + $0x28] sm:$0xf]
        %v569 = vld [vmem:[#allocation7 + $0x2c] sm:$0xf]
        %v570 = vld [vmem:[#allocation7 + $0x30] sm:$0xf]
        %v571 = vld [vmem:[#allocation7 + $0x34] sm:$0xf]
        %v572 = vld [vmem:[#allocation7 + $0x38] sm:$0xf]
        %v573 = vld [vmem:[#allocation7 + $0x3c] sm:$0xf]
        %v574 = vld [vmem:[%s5] sm:$0x1]
        %v576 = vlaneseq
        %v577 = vshrl.u32 %v576, 7
        %v578 = vsub.s32 0, %v577
        %v579 = vrot.slane %v574, %v578
        %v597 = vunpack.c.l.b16 %v558
        %v598 = vunpack.c.l.b16 %v559
        %v599 = vunpack.c.l.b16 %v560
        %v600 = vunpack.c.l.b16 %v561
        %v601 = vunpack.c.l.b16 %v562
        %v602 = vunpack.c.l.b16 %v563
        %v603 = vunpack.c.l.b16 %v564
        %v604 = vunpack.c.l.b16 %v565
        %v605 = vunpack.c.l.b16 %v566
        %v606 = vunpack.c.l.b16 %v567
        %v607 = vunpack.c.l.b16 %v568
        %v608 = vunpack.c.l.b16 %v569
        %v609 = vunpack.c.l.b16 %v570
        %v610 = vunpack.c.l.b16 %v571
        %v611 = vunpack.c.l.b16 %v572
        %v612 = vunpack.c.l.b16 %v573
        %v613 = vpack.c.b16 %v598, %v597
        %v614 = vpack.c.b16 %v600, %v599
        %v615 = vpack.c.b16 %v602, %v601
        %v616 = vpack.c.b16 %v604, %v603
        %v617 = vpack.c.b16 %v606, %v605
        %v618 = vpack.c.b16 %v608, %v607
        %v619 = vpack.c.b16 %v610, %v609
        %v620 = vpack.c.b16 %v612, %v611
        %629 = vmatprep.subr.bf16.mxu0 0
        %630 = vmatpush1.bf16.msra.mxu0 %v620
        %631 = vmatprep.subr.bf16.mxu0 0
        %632 = vmatpush1.bf16.msra.mxu0 %v619
        %633 = vmatprep.subr.bf16.mxu0 0
        %634 = vmatpush1.bf16.msra.mxu0 %v618
        %635 = vmatprep.subr.bf16.mxu0 0
        %636 = vmatpush1.bf16.msra.mxu0 %v617
        %637 = vmatprep.subr.bf16.mxu0 0
        %638 = vmatpush1.bf16.msra.mxu0 %v616
        %639 = vmatprep.subr.bf16.mxu0 0
        %640 = vmatpush1.bf16.msra.mxu0 %v615
        %641 = vmatprep.subr.bf16.mxu0 0
        %642 = vmatpush1.bf16.msra.mxu0 %v614
        %643 = vmatprep.subr.bf16.mxu0 0
        %644 = vmatpush1.bf16.msra.mxu0 %v613
        %645 = vmatprep.subr.bf16.mxu0 0
        %646 = vmatpush2.bf16.msra.mxu0 0
        %647 = vmatprep.subr.bf16.mxu0 0
        %648 = vmatpush2.bf16.msra.mxu0 0
        %649 = vmatprep.subr.bf16.mxu0 0
        %650 = vmatpush2.bf16.msra.mxu0 0
        %651 = vmatprep.subr.bf16.mxu0 0
        %652 = vmatpush2.bf16.msra.mxu0 0
        %653 = vmatprep.subr.bf16.mxu0 0
        %654 = vmatpush2.bf16.msra.mxu0 0
        %655 = vmatprep.subr.bf16.mxu0 0
        %656 = vmatpush2.bf16.msra.mxu0 0
        %657 = vmatprep.subr.bf16.mxu0 0
        %658 = vmatpush2.bf16.msra.mxu0 0
        %659 = vmatprep.subr.bf16.mxu0 0
        %660 = vmatpush2.bf16.msra.mxu0 0
        %661 = vmatprep.mubr.bf16.mxu0 0
        %662 = vmatmul.mubr.bf16.gmra.mxu0 %v557
        %v663 = vpop.f32.mrf.mxu0
        %v664 = vadd.f32 %v579, %v663
        %v665 = vpop.f32.mrf.mxu0
        %v666 = vpop.f32.mrf.mxu0
        %v667 = vpop.f32.mrf.mxu0
        %668 = vdwg.mxu0
        %669 = vmax.xlane.f32.xlu0 %v664
        %v670 = vpop.xlane.xlu0 %669
        %v671 = vsub.f32 %v664, %v670
        %v672 = vmul.f32 %v671, 1.442695
        %v673 = vpow.pop %v672
        %674 = vadd.xlane.f32.xlu0 %v673
        %v675 = vpop.xlane.xlu0 %674
        %v676 = vrcp.pop %v675
        %v677 = vmul.f32 %v673, %v676
        %v678 = vpack.c.bf16 %v677, %v677
        %679 = vst [vmem:[%s314] sm:$0xf] %v678
        %vm680 = vcmp.eq.f32.partialorder %v664, %v670
        %v681 = vsel %vm680, %v332, 128
        %v682 = vand.u32 %v681, 65535
        %v683 = vshra.s32 %v681, 16
        %v684 = vcvt.s32.f32 %v682
        %v685 = vcvt.s32.f32 %v683
        %686 = vmin.xlane.f32.xlu0 %v685
        %v687 = vpop.xlane.xlu0 %686
        %vm688 = vcmp.eq.f32.partialorder %v685, %v687
        %v689 = vsel %vm688, %v684, inf
        %690 = vmin.xlane.f32.xlu0 %v689
        %v691 = vpop.xlane.xlu0 %690
        %v692 = vcvt.f32.s32 %v691
        %v693 = vcvt.f32.s32 %v687
        %v694 = vshll.u32 %v693, 16
        %v695 = vadd.s32 %v694, %v692
        %vm696 = vcmask 7168
        %697 = vst.msk [vmem:[%s328] sm:$0xff] %vm696, %v695
        %s698 = sand.u32 %s163, 1
        %s699 = scalar_lea.sflag [#allocation4], %s698
        %s700 = sand.u32 %s163, 1
        %s701 = smul.addr %s700, 4
        %s702 = scalar_lea.vmem [#allocation8], %s701
        %p703 = scmp.lt.s32.totalorder %s24, 1
        %s704 = scalar_select %p703, %s24, 1
        %s705 = smul.addr %s704, 8
        %s706 = scalar_lea.vmem %s7, %s705
        // Predicated region
        $region57: #{tpu_custom_call.1} parent=43 // pred_check
          %p707 = pneg %p173
        $region58: #{tpu_custom_call.1} parent=43 // pred_check_branch
          %709 = sbr.rel (%p707) target = $region60
        $region59: #{tpu_custom_call.1} parent=43 // pred_region
          %s711 = ssub.s32 64, 64
          %712 = vsyncadd %s699, %s711
          %s713 = smul.addr %s24, 64
          %s714 = scalar_lea.hbm %s6, %s713
          %s716 = sshll.u32 %s702, 4
          %s717 = int_to_ptr.vmem [resolvable:$true] %s716
          %719 = dma.vmem_to_hbm [thread:$0]  %s717, 64, %s714, %s699
        $region60: #{tpu_custom_call.1} parent=43 // pred_fallthru
          _
        // Predicated region
        $region61: #{tpu_custom_call.1} parent=43 // pred_check
          %p720 = pneg %p199
        $region62: #{tpu_custom_call.1} parent=43 // pred_check_branch
          %722 = sbr.rel (%p720) target = $region64
        $region63: #{tpu_custom_call.1} parent=43 // pred_region
          _
        $region64: #{tpu_custom_call.1} parent=43 // pred_fallthru
          _
      $region44: #{tpu_custom_call.1} parent=5 // pred_fallthru
        _
      %p723 = scmp.le.s32.totalorder 2, %s19
      // Predicated region
      $region65: #{tpu_custom_call.1} parent=5 // pred_check
        %p724 = pneg %p723
      $region66: #{tpu_custom_call.1} parent=5 // pred_check_branch
        %726 = sbr.rel (%p724) target = $region68
      $region67: #{tpu_custom_call.1} parent=5 // pred_region
        %s727 = ssub.s32 %s19, 2
        // Predicated region
        $region69: #{tpu_custom_call.1} parent=67 // pred_check
          %p728 = pneg %p179
        $region70: #{tpu_custom_call.1} parent=67 // pred_check_branch
          %730 = sbr.rel (%p728) target = $region72
        $region71: #{tpu_custom_call.1} parent=67 // pred_region
          %s731 = sand.u32 %s164, 1
          %s732 = scalar_lea.sflag [#allocation4], %s731
          %s733 = sand.u32 %s164, 1
          %s734 = smul.addr %s733, 4
          %s735 = scalar_lea.vmem [#allocation8], %s734
          %736 = dma.done %s732, 64
        $region72: #{tpu_custom_call.1} parent=67 // pred_fallthru
          _
        // Predicated region
        $region73: #{tpu_custom_call.1} parent=67 // pred_check
          %p737 = pneg %p205
        $region74: #{tpu_custom_call.1} parent=67 // pred_check_branch
          %739 = sbr.rel (%p737) target = $region76
        $region75: #{tpu_custom_call.1} parent=67 // pred_region
          %p740 = scmp.lt.s32.totalorder %s25, 1
          %s741 = scalar_select %p740, %s25, 1
          %s742 = smul.addr %s741, 8
          %s743 = scalar_lea.vmem %s7, %s742
        $region76: #{tpu_custom_call.1} parent=67 // pred_fallthru
          _
      $region68: #{tpu_custom_call.1} parent=5 // pred_fallthru
        _
    $region6: #{tpu_custom_call.1} parent=1 // loop_footer
      %s23 = sadd.s32 1, %s19
    $region7: #{tpu_custom_call.1} parent=1 // loop_footer_branch
      %18 = sbr.rel target = $region3
    $region8: #{tpu_custom_call.1} parent=1 // loop_exit
      _
    %744 = vsyncpa [#allocation3], 1
    %s745 = scalar_lea.sflag [#allocation3], 1
    %746 = vsyncpa %s745, 1
    %747 = vsyncpa [#allocation6], 1
    %748 = vsyncpa [#allocation4], 1
    %s749 = scalar_lea.sflag [#allocation4], 1
    %750 = vsyncpa %s749, 1

</llo_original>
